<compile_context>
chip_gen: v5e
topology: v5e:2x2
jax: 0.10.0
libtpu: 0.0.40
codegen_flags: <defaults>
</compile_context>

<pallas_src>
import jax
import jax.numpy as jnp
from jax.experimental import pallas as pl
from jax.experimental.pallas import tpu as pltpu

EPS = 1e-5
VMEM_LIMIT = 32 * 1024 * 1024  # explicit, safe on v5e/v6e/v7x


def _matmul_stats_kernel(w_ref, p_ref, y_ref, sum_ref, sumsq_ref):
    """Pass 1: conv GEMM on the MXU + per-channel sum / sum-of-squares.

    w:   (Cout, K)   bf16  (same block every iteration)
    p:   (K, TM)     bf16  (im2col patches, transposed -> lane-dense M)
    y:   (Cout, TM)  f32   pre-BN conv output tile (lane-dense store)
    sum/sumsq: (Cout, 1) f32 accumulators, resident across the M grid axis
    """
    @pl.when(pl.program_id(0) == 0)
    def _():
        sum_ref[...] = jnp.zeros_like(sum_ref)
        sumsq_ref[...] = jnp.zeros_like(sumsq_ref)

    y = jnp.dot(w_ref[...], p_ref[...], preferred_element_type=jnp.float32)
    y_ref[...] = y
    # cross-lane reductions (XLU) over the M tile; f32 accumulation
    sum_ref[...] += jnp.sum(y, axis=-1, keepdims=True)
    sumsq_ref[...] += jnp.sum(y * y, axis=-1, keepdims=True)


def _bn_relu_kernel(y_ref, scale_ref, shift_ref, o_ref):
    """Pass 2: per-channel affine (folded BN) + ReLU, all f32 elementwise."""
    o_ref[...] = jnp.maximum(y_ref[...] * scale_ref[...] + shift_ref[...], 0.0)


def conv2d_bn_relu(x, weight, bias, gamma, beta, padding, *, tm=256):
    """x: (N, Cin, H, W) NCHW.  weight: (Cout, Cin, kh, kw).  Returns NCHW."""
    del bias  # exactly cancelled by BatchNorm's mean subtraction (see header)

    N, Cin, H, W = x.shape
    Cout, _, kh, kw = weight.shape
    Ho = H + 2 * padding - kh + 1
    Wo = W + 2 * padding - kw + 1
    M = N * Ho * Wo
    K = Cin * kh * kw

    # --- glue: im2col built directly in transposed (K, M) layout ------------
    x_pad = jnp.pad(x, ((0, 0), (0, 0), (padding, padding), (padding, padding)))
    cols = jnp.stack(
        [x_pad[:, :, i:i + Ho, j:j + Wo] for i in range(kh) for j in range(kw)],
        axis=2,
    )  # (N, Cin, kh*kw, Ho, Wo); row index k = cin*kh*kw + i*kw + j (PyTorch order)
    patches_t = cols.transpose(1, 2, 0, 3, 4).reshape(K, M)

    # Tile / pad M to a lane-dense multiple.  Padded columns are all-zero and
    # (with no conv bias) contribute exactly 0 to both sum and sumsq, so the
    # global BN statistics divide by the true M and remain exact.
    TM = min(tm, 128 * pl.cdiv(M, 128))
    TM = max(128, (TM // 128) * 128)
    Mp = TM * pl.cdiv(M, TM)
    if Mp != M:
        patches_t = jnp.pad(patches_t, ((0, 0), (0, Mp - M)))

    # bf16 matmul operands, f32 accumulation inside the kernel
    patches_t = patches_t.astype(jnp.bfloat16)
    w_mat = weight.reshape(Cout, K).astype(jnp.bfloat16)

    n_tiles = Mp // TM

    # ---------------- pass 1: tiled GEMM + global BN statistics -------------
    y_pre, ch_sum, ch_sumsq = pl.pallas_call(
        _matmul_stats_kernel,
        out_shape=(
            jax.ShapeDtypeStruct((Cout, Mp), jnp.float32),
            jax.ShapeDtypeStruct((Cout, 1), jnp.float32),
            jax.ShapeDtypeStruct((Cout, 1), jnp.float32),
        ),
        grid=(n_tiles,),
        in_specs=[
            pl.BlockSpec((Cout, K), lambda i: (0, 0)),
            pl.BlockSpec((K, TM), lambda i: (0, i)),
        ],
        out_specs=(
            pl.BlockSpec((Cout, TM), lambda i: (0, i)),
            pl.BlockSpec((Cout, 1), lambda i: (0, 0)),
            pl.BlockSpec((Cout, 1), lambda i: (0, 0)),
        ),
        compiler_params=pltpu.CompilerParams(
            dimension_semantics=("arbitrary",),  # stats accumulators resident
            vmem_limit_bytes=VMEM_LIMIT,
        ),
        cost_estimate=pl.CostEstimate(
            flops=2 * Mp * K * Cout,
            bytes_accessed=Mp * K * 2 + Cout * K * 2 + Mp * Cout * 4,
            transcendentals=0,
        ),
    )(w_mat, patches_t)

    # tiny O(Cout) closed form for the folded BN affine (outside the kernel)
    mean = ch_sum / M
    var = jnp.maximum(ch_sumsq / M - mean * mean, 0.0)
    inv = jax.lax.rsqrt(var + EPS)
    scale = gamma.reshape(Cout, 1).astype(jnp.float32) * inv
    shift = beta.reshape(Cout, 1).astype(jnp.float32) - mean * scale

    # ---------------- pass 2: normalize + ReLU (parallel over M tiles) ------
    out_t = pl.pallas_call(
        _bn_relu_kernel,
        out_shape=jax.ShapeDtypeStruct((Cout, Mp), jnp.float32),
        grid=(n_tiles,),
        in_specs=[
            pl.BlockSpec((Cout, TM), lambda i: (0, i)),
            pl.BlockSpec((Cout, 1), lambda i: (0, 0)),
            pl.BlockSpec((Cout, 1), lambda i: (0, 0)),
        ],
        out_specs=pl.BlockSpec((Cout, TM), lambda i: (0, i)),
        compiler_params=pltpu.CompilerParams(
            dimension_semantics=("parallel",),  # v7x: split across both TCs
            vmem_limit_bytes=VMEM_LIMIT,
        ),
    )(y_pre, scale, shift)

    # back to NCHW (small glue transpose)
    return out_t[:, :M].reshape(Cout, N, Ho, Wo).transpose(1, 0, 2, 3)


if __name__ == "__main__":
    # small shapes consistent with the module's forward
    N, Cin, H, W = 2, 4, 16, 16
    Cout, ksize, padding = 8, 3, 1

    key = jax.random.PRNGKey(0)
    kx, kw_, kb = jax.random.split(key, 3)

    x = jax.random.normal(kx, (N, Cin, H, W), dtype=jnp.float32)

    # Conv2d init: uniform +/- 1/sqrt(fan_in); BatchNorm2d: gamma=1, beta=0
    fan_in = Cin * ksize * ksize
    bound = 1.0 / (fan_in ** 0.5)
    weight = jax.random.uniform(
        kw_, (Cout, Cin, ksize, ksize), minval=-bound, maxval=bound,
        dtype=jnp.float32)
    bias = jax.random.uniform(kb, (Cout,), minval=-bound, maxval=bound,
                              dtype=jnp.float32)
    gamma = jnp.ones((Cout,), dtype=jnp.float32)
    beta = jnp.zeros((Cout,), dtype=jnp.float32)

    out = conv2d_bn_relu(x, weight, bias, gamma, beta, padding)
    jax.block_until_ready(out)
    assert out.shape == (N, Cout, H, W)

    # pure-JAX reference (conv -> training-mode BN -> ReLU); bf16 operands in
    # the kernel, so use a loose tolerance
    y = jax.lax.conv_general_dilated(
        x, weight, window_strides=(1, 1),
        padding=((padding, padding), (padding, padding)),
        dimension_numbers=("NCHW", "OIHW", "NCHW"),
    ) + bias.reshape(1, Cout, 1, 1)
    m = y.mean(axis=(0, 2, 3), keepdims=True)
    v = ((y - m) ** 2).mean(axis=(0, 2, 3), keepdims=True)
    ref = jnp.maximum(
        (y - m) * jax.lax.rsqrt(v + EPS) * gamma.reshape(1, Cout, 1, 1)
        + beta.reshape(1, Cout, 1, 1), 0.0)
    assert jnp.allclose(out, ref, atol=5e-2, rtol=5e-2)

    print("KERNEL_OK")
</pallas_src>

<mosaic_0001>
module attributes {stable_mosaic.version = 11 : i64} {
  func.func @_matmul_stats_kernel(%arg0: i32, %arg1: memref<8x36xbf16, #tpu.memory_space<vmem>>, %arg2: memref<36x256xbf16, #tpu.memory_space<vmem>>, %arg3: memref<8x256xf32, #tpu.memory_space<vmem>>, %arg4: memref<8x1xf32, #tpu.memory_space<vmem>>, %arg5: memref<8x1xf32, #tpu.memory_space<vmem>>) attributes {dimension_semantics = [#tpu.dimension_semantics<arbitrary>], iteration_bounds = array<i64: 2>, scalar_prefetch = 0 : i64, scratch_operands = 0 : i64, tpu.core_type = #tpu.core_type<tc>, window_params = [{pipeline_mode = #tpu.pipeline_mode<synchronous>, transform_indices = @transform_0, window_bounds = array<i64: 8, 36>}, {transform_indices = @transform_1, window_bounds = array<i64: 36, 256>}, {transform_indices = @transform_2, window_bounds = array<i64: 8, 256>}, {pipeline_mode = #tpu.pipeline_mode<synchronous>, transform_indices = @transform_3, window_bounds = array<i64: 8, 1>}, {pipeline_mode = #tpu.pipeline_mode<synchronous>, transform_indices = @transform_4, window_bounds = array<i64: 8, 1>}]} {
    %c0_i32 = arith.constant 0 : i32
    %0 = arith.cmpi eq, %arg0, %c0_i32 : i32
    %1 = arith.extui %0 : i1 to i32
    %c0_i32_0 = arith.constant 0 : i32
    %2 = arith.cmpi ne, %1, %c0_i32_0 : i32
    scf.if %2 {
      %cst_16 = arith.constant 0.000000e+00 : f32
      %18 = vector.broadcast %cst_16 : f32 to vector<8x1xf32>
      %c0_17 = arith.constant 0 : index
      %c0_18 = arith.constant 0 : index
      %19 = vector.load %arg4[%c0_17, %c0_18] : memref<8x1xf32, #tpu.memory_space<vmem>>, vector<8x1xf32>
      tpu.vector_store %arg4[%c0_17, %c0_18], %18 {strides = array<i32>} : memref<8x1xf32, #tpu.memory_space<vmem>>, vector<8x1xf32>,
      %cst_19 = arith.constant 0.000000e+00 : f32
      %20 = vector.broadcast %cst_19 : f32 to vector<8x1xf32>
      %c0_20 = arith.constant 0 : index
      %c0_21 = arith.constant 0 : index
      %21 = vector.load %arg5[%c0_20, %c0_21] : memref<8x1xf32, #tpu.memory_space<vmem>>, vector<8x1xf32>
      tpu.vector_store %arg5[%c0_20, %c0_21], %20 {strides = array<i32>} : memref<8x1xf32, #tpu.memory_space<vmem>>, vector<8x1xf32>,
    } else {
    }
    %c0 = arith.constant 0 : index
    %c0_1 = arith.constant 0 : index
    %3 = vector.load %arg1[%c0, %c0_1] : memref<8x36xbf16, #tpu.memory_space<vmem>>, vector<8x36xbf16>
    %c0_2 = arith.constant 0 : index
    %c0_3 = arith.constant 0 : index
    %4 = vector.load %arg2[%c0_2, %c0_3] : memref<36x256xbf16, #tpu.memory_space<vmem>>, vector<36x256xbf16>
    %cst = arith.constant dense<0.000000e+00> : vector<8x256xf32>
    %5 = tpu.matmul %3, %4, %cst {dimension_numbers = #tpu.dot_dimension_numbers<[1], [0], [0], [1], [0, 0, 1, 1], [], []>} : vector<8x36xbf16>, vector<36x256xbf16>, vector<8x256xf32> -> vector<8x256xf32>
    %c0_4 = arith.constant 0 : index
    %c0_5 = arith.constant 0 : index
    %6 = vector.load %arg3[%c0_4, %c0_5] : memref<8x256xf32, #tpu.memory_space<vmem>>, vector<8x256xf32>
    tpu.vector_store %arg3[%c0_4, %c0_5], %5 {strides = array<i32>} : memref<8x256xf32, #tpu.memory_space<vmem>>, vector<8x256xf32>,
    %c0_6 = arith.constant 0 : index
    %c0_7 = arith.constant 0 : index
    %7 = vector.load %arg4[%c0_6, %c0_7] : memref<8x1xf32, #tpu.memory_space<vmem>>, vector<8x1xf32>
    %cst_8 = arith.constant dense<0.000000e+00> : vector<8xf32>
    %8 = vector.multi_reduction <add>, %5, %cst_8 [1] : vector<8x256xf32> to vector<8xf32>
    %9 = vector.shape_cast %8 : vector<8xf32> to vector<8x1xf32>
    %10 = arith.addf %7, %9 : vector<8x1xf32>
    %c0_9 = arith.constant 0 : index
    %c0_10 = arith.constant 0 : index
    %11 = vector.load %arg4[%c0_9, %c0_10] : memref<8x1xf32, #tpu.memory_space<vmem>>, vector<8x1xf32>
    tpu.vector_store %arg4[%c0_9, %c0_10], %10 {strides = array<i32>} : memref<8x1xf32, #tpu.memory_space<vmem>>, vector<8x1xf32>,
    %c0_11 = arith.constant 0 : index
    %c0_12 = arith.constant 0 : index
    %12 = vector.load %arg5[%c0_11, %c0_12] : memref<8x1xf32, #tpu.memory_space<vmem>>, vector<8x1xf32>
    %13 = arith.mulf %5, %5 : vector<8x256xf32>
    %cst_13 = arith.constant dense<0.000000e+00> : vector<8xf32>
    %14 = vector.multi_reduction <add>, %13, %cst_13 [1] : vector<8x256xf32> to vector<8xf32>
    %15 = vector.shape_cast %14 : vector<8xf32> to vector<8x1xf32>
    %16 = arith.addf %12, %15 : vector<8x1xf32>
    %c0_14 = arith.constant 0 : index
    %c0_15 = arith.constant 0 : index
    %17 = vector.load %arg5[%c0_14, %c0_15] : memref<8x1xf32, #tpu.memory_space<vmem>>, vector<8x1xf32>
    tpu.vector_store %arg5[%c0_14, %c0_15], %16 {strides = array<i32>} : memref<8x1xf32, #tpu.memory_space<vmem>>, vector<8x1xf32>,
    return
  }
  func.func @transform_0(%arg0: i32) -> (i32, i32) {
    %c0_i32 = arith.constant 0 : i32
    %c0_i32_0 = arith.constant 0 : i32
    %c0_i32_1 = arith.constant 0 : i32
    return %c0_i32, %c0_i32_0 : i32, i32
  }
  func.func @transform_1(%arg0: i32) -> (i32, i32) {
    %c0_i32 = arith.constant 0 : i32
    %c0_i32_0 = arith.constant 0 : i32
    return %c0_i32, %arg0 : i32, i32
  }
  func.func @transform_2(%arg0: i32) -> (i32, i32) {
    %c0_i32 = arith.constant 0 : i32
    %c0_i32_0 = arith.constant 0 : i32
    return %c0_i32, %arg0 : i32, i32
  }
  func.func @transform_3(%arg0: i32) -> (i32, i32) {
    %c0_i32 = arith.constant 0 : i32
    %c0_i32_0 = arith.constant 0 : i32
    %c0_i32_1 = arith.constant 0 : i32
    return %c0_i32, %c0_i32_0 : i32, i32
  }
  func.func @transform_4(%arg0: i32) -> (i32, i32) {
    %c0_i32 = arith.constant 0 : i32
    %c0_i32_0 = arith.constant 0 : i32
    %c0_i32_1 = arith.constant 0 : i32
    return %c0_i32, %c0_i32_0 : i32, i32
  }
}

</mosaic_0001>

<llo_original>
// kernel: tpu_custom_call.1
$region0: #{tpu_custom_call.1}
  #allocation0 [shape = 'u32[]', space=smem, size = 0x4, offset = 0x4, fixed_abs, tag = 'smem constant byte address 0x4 - core index']
  #allocation1 [shape = 'u32[72,128]{1,0:T(1,128)}', space=vmem, size = 0x9000, scoped, tag = 'internal scratch']
  %s0 = inlined_call_operand.hbm [shape: bf16[8,36], index: 0, kind: input, shape index: {}]
  %s1 = inlined_call_operand.hbm [shape: bf16[36,512], index: 1, kind: input, shape index: {}]
  %s2 = inlined_call_operand.hbm [shape: f32[8,512], index: 2, kind: output, shape index: {0}]
  %s3 = inlined_call_operand.vmem [shape: f32[8,1], index: 3, kind: output, shape index: {1}]
  %s4 = inlined_call_operand.vmem [shape: f32[8,1], index: 4, kind: output, shape index: {2}]
  %5 = xla_tuple %s2, %s3, %s4
  %s6 = sld [smem:[#allocation0]]
  $region69: #{tpu_custom_call.1} parent=0
    _
  %s8 = ssub.s32 1, %s6
  %s9 = scalar_select 0, %s8, %s6
  $region1: #{tpu_custom_call.1} parent=0
    #allocation2 [shape = 'u8[2048]{0}', space=vmem, size = 0x800, scoped, tag = 'input window, operand 0, single buffered']
    #allocation3 [shape = 's32[2]{0}', space=sflag, size = 0x8, scoped, tag = 'scoped memory for tpu_custom_call.1']
    #allocation4 [shape = 's32[2]{0}', space=sflag, size = 0x8, scoped, tag = 'scoped memory for tpu_custom_call.1']
    #allocation5 [shape = 'u8[40960]{0}', space=vmem, size = 0xa000, scoped, tag = 'input window, operand 1']
    #allocation6 [shape = 's32[2]{0}', space=sflag, size = 0x8, scoped, tag = 'scoped memory for tpu_custom_call.1']
    #allocation7 [shape = 'u8[16384]{0}', space=vmem, size = 0x4000, scoped, tag = 'output window, operand 0']
    %10 = vsyncpa [#allocation3], 0
    %11 = vsyncpa [#allocation6], 0
    %s12 = scalar_lea.sflag [#allocation6], 1
    %13 = vsyncpa %s12, 0
    %14 = vsyncpa [#allocation4], 0
    %s15 = scalar_lea.sflag [#allocation4], 1
    %16 = vsyncpa %s15, 0
    loop: start=0, step=1, limit=4
    $region2: #{tpu_custom_call.1} parent=1 // loop_pre_header
      _
    $region3: #{tpu_custom_call.1} parent=1 // loop_header
      %s18 = sphi 0, %s22
      %p19 = scmp.ge.s32.totalorder %s18, 4
      %s26 = sphi 0, %s26
      %s28 = sphi 0, %s26
      %s29 = sphi 0, %s28
      %s43 = sphi 0, %s29
      %s49 = sphi 0, %s51
      %s52 = sphi 0, %s49
      %s53 = sphi 0, %s52
      %s69 = sphi 0, %s53
      %s75 = sphi 0, %s77
      %s78 = sphi 0, %s75
      %s79 = sphi 0, %s78
      %s95 = sphi 0, %s79
      %s99 = sphi 0, %s99
      %s101 = sphi 0, %s99
      %s102 = sphi 0, %s101
      %s116 = sphi 0, %s102
      %s120 = sphi 0, %s120
      %s122 = sphi 0, %s120
      %s123 = sphi 0, %s122
      %s137 = sphi 0, %s123
    $region4: #{tpu_custom_call.1} parent=1 // loop_header_branch
      %21 = sbr.rel (%p19) target = $region8
    $region5: #{tpu_custom_call.1} parent=1 // loop_body
      %s23 = ssub.s32 %s18, 1
      %s24 = ssub.s32 %s18, 2
      %s25 = sadd.s32 %s18, 1
      %s27 = sadd.s32 %s26, 1
      %p30 = scmp.eq.s32.totalorder %s18, 1
      %p31 = scmp.ne.s32.totalorder %s26, %s28
      %p32 = scmp.eq.s32.totalorder %s18, 0
      %p33 = por %p31, %p32
      %p34 = scmp.ne.s32.totalorder %s26, %s28
      %p35 = scmp.eq.s32.totalorder %s23, 1
      %p36 = por %p34, %p35
      %p37 = scmp.ne.s32.totalorder %s28, %s29
      %p38 = scmp.eq.s32.totalorder %s23, 0
      %p39 = por %p37, %p38
      %p40 = scmp.ne.s32.totalorder %s28, %s29
      %p41 = scmp.eq.s32.totalorder %s24, 1
      %p42 = por %p40, %p41
      %p44 = scmp.ne.s32.totalorder %s29, %s43
      %p45 = scmp.eq.s32.totalorder %s24, 0
      %p46 = por %p44, %p45
      %s47 = ssub.s32 %s18, %s25
      %p48 = scmp.eq.s32.totalorder %s47, 0
      %s50 = sadd.s32 %s49, 1
      %s51 = scalar_select %p48, %s49, %s50
      %p54 = pneg %p48
      %p55 = scmp.eq.s32.totalorder %s18, 1
      %p56 = por %p54, %p55
      %p57 = scmp.ne.s32.totalorder %s49, %s52
      %p58 = scmp.eq.s32.totalorder %s18, 0
      %p59 = por %p57, %p58
      %p60 = scmp.ne.s32.totalorder %s49, %s52
      %p61 = scmp.eq.s32.totalorder %s23, 1
      %p62 = por %p60, %p61
      %p63 = scmp.ne.s32.totalorder %s52, %s53
      %p64 = scmp.eq.s32.totalorder %s23, 0
      %p65 = por %p63, %p64
      %p66 = scmp.ne.s32.totalorder %s52, %s53
      %p67 = scmp.eq.s32.totalorder %s24, 1
      %p68 = por %p66, %p67
      %p70 = scmp.ne.s32.totalorder %s53, %s69
      %p71 = scmp.eq.s32.totalorder %s24, 0
      %p72 = por %p70, %p71
      %s73 = ssub.s32 %s18, %s25
      %p74 = scmp.eq.s32.totalorder %s73, 0
      %s76 = sadd.s32 %s75, 1
      %s77 = scalar_select %p74, %s75, %s76
      %p80 = pneg %p74
      %p81 = scmp.eq.s32.totalorder %s18, 1
      %p82 = por %p80, %p81
      %p83 = scmp.ne.s32.totalorder %s75, %s78
      %p84 = scmp.eq.s32.totalorder %s18, 0
      %p85 = por %p83, %p84
      %p86 = scmp.ne.s32.totalorder %s75, %s78
      %p87 = scmp.eq.s32.totalorder %s23, 1
      %p88 = por %p86, %p87
      %p89 = scmp.ne.s32.totalorder %s78, %s79
      %p90 = scmp.eq.s32.totalorder %s23, 0
      %p91 = por %p89, %p90
      %p92 = scmp.ne.s32.totalorder %s78, %s79
      %p93 = scmp.eq.s32.totalorder %s24, 1
      %p94 = por %p92, %p93
      %p96 = scmp.ne.s32.totalorder %s79, %s95
      %p97 = scmp.eq.s32.totalorder %s24, 0
      %p98 = por %p96, %p97
      %s100 = sadd.s32 %s99, 1
      %p103 = scmp.eq.s32.totalorder %s18, 1
      %p104 = scmp.ne.s32.totalorder %s99, %s101
      %p105 = scmp.eq.s32.totalorder %s18, 0
      %p106 = por %p104, %p105
      %p107 = scmp.ne.s32.totalorder %s99, %s101
      %p108 = scmp.eq.s32.totalorder %s23, 1
      %p109 = por %p107, %p108
      %p110 = scmp.ne.s32.totalorder %s101, %s102
      %p111 = scmp.eq.s32.totalorder %s23, 0
      %p112 = por %p110, %p111
      %p113 = scmp.ne.s32.totalorder %s101, %s102
      %p114 = scmp.eq.s32.totalorder %s24, 1
      %p115 = por %p113, %p114
      %p117 = scmp.ne.s32.totalorder %s102, %s116
      %p118 = scmp.eq.s32.totalorder %s24, 0
      %p119 = por %p117, %p118
      %s121 = sadd.s32 %s120, 1
      %p124 = scmp.eq.s32.totalorder %s18, 1
      %p125 = scmp.ne.s32.totalorder %s120, %s122
      %p126 = scmp.eq.s32.totalorder %s18, 0
      %p127 = por %p125, %p126
      %p128 = scmp.ne.s32.totalorder %s120, %s122
      %p129 = scmp.eq.s32.totalorder %s23, 1
      %p130 = por %p128, %p129
      %p131 = scmp.ne.s32.totalorder %s122, %s123
      %p132 = scmp.eq.s32.totalorder %s23, 0
      %p133 = por %p131, %p132
      %p134 = scmp.ne.s32.totalorder %s122, %s123
      %p135 = scmp.eq.s32.totalorder %s24, 1
      %p136 = por %p134, %p135
      %p138 = scmp.ne.s32.totalorder %s123, %s137
      %p139 = scmp.eq.s32.totalorder %s24, 0
      %p140 = por %p138, %p139
      %p141 = scmp.le.s32.totalorder 1, %s18
      %p142 = scmp.lt.s32.totalorder %s18, 3
      %p143 = pnand %p141, %p142
      %p144 = pneg %p143
      // Predicated region
      $region9: #{tpu_custom_call.1} parent=5 // pred_check
        _
      $region10: #{tpu_custom_call.1} parent=5 // pred_check_branch
        %146 = sbr.rel (%p143) target = $region12
      $region11: #{tpu_custom_call.1} parent=5 // pred_region
        %s147 = ssub.s32 %s18, 1
        // Predicated region
        $region13: #{tpu_custom_call.1} parent=11 // pred_check
          %p148 = pneg %p39
        $region14: #{tpu_custom_call.1} parent=11 // pred_check_branch
          %150 = sbr.rel (%p148) target = $region16
        $region15: #{tpu_custom_call.1} parent=11 // pred_region
          %152 = vsyncadd [#allocation3], 0
          %s154 = sshll.u32 %s0, 4
          %s155 = int_to_ptr.hbm [resolvable:$true] %s154
          %s156 = sshll.u32 [#allocation2], 4
          %s157 = int_to_ptr.vmem [resolvable:$true] %s156
          %159 = dma.hbm_to_vmem [thread:$0]  %s155, 64, %s157, [#allocation3]
        $region16: #{tpu_custom_call.1} parent=11 // pred_fallthru
          _
      $region12: #{tpu_custom_call.1} parent=5 // pred_fallthru
        _
      %p160 = scmp.lt.s32.totalorder %s18, 2
      // Predicated region
      $region17: #{tpu_custom_call.1} parent=5 // pred_check
        %p161 = pneg %p160
      $region18: #{tpu_custom_call.1} parent=5 // pred_check_branch
        %163 = sbr.rel (%p161) target = $region20
      $region19: #{tpu_custom_call.1} parent=5 // pred_region
        // Predicated region
        $region21: #{tpu_custom_call.1} parent=19 // pred_check
          %p164 = pneg %p59
        $region22: #{tpu_custom_call.1} parent=19 // pred_check_branch
          %166 = sbr.rel (%p164) target = $region24
        $region23: #{tpu_custom_call.1} parent=19 // pred_region
          %s167 = sand.u32 %s49, 1
          %s168 = scalar_lea.sflag [#allocation6], %s167
          %s169 = sand.u32 %s49, 1
          %s170 = smul.addr %s169, 40
          %s171 = scalar_lea.vmem [#allocation5], %s170
          %s172 = smul.u32 2, %s18
          %174 = vsyncadd %s168, 0
          %s175 = smul.addr %s172, 4
          %s176 = scalar_lea.hbm %s1, %s175
          %s177 = sshll.u32 %s176, 4
          %s178 = int_to_ptr.hbm [resolvable:$true] %s177
          %s179 = sshll.u32 %s171, 4
          %s180 = int_to_ptr.vmem [resolvable:$true] %s179
          %185 = dma.hbm_to_vmem [thread:$0]  %s178, 640, %s180, %s168, 256, 128, 8
        $region24: #{tpu_custom_call.1} parent=19 // pred_fallthru
          _
      $region20: #{tpu_custom_call.1} parent=5 // pred_fallthru
        _
      %p186 = scmp.le.s32.totalorder 1, %s18
      %p187 = scmp.lt.s32.totalorder %s18, 3
      %p188 = pnand %p186, %p187
      %p189 = pneg %p188
      // Predicated region
      $region25: #{tpu_custom_call.1} parent=5 // pred_check
        _
      $region26: #{tpu_custom_call.1} parent=5 // pred_check_branch
        %191 = sbr.rel (%p188) target = $region28
      $region27: #{tpu_custom_call.1} parent=5 // pred_region
        %s192 = ssub.s32 %s18, 1
        // Predicated region
        $region29: #{tpu_custom_call.1} parent=27 // pred_check
          %p193 = pneg %p39
        $region30: #{tpu_custom_call.1} parent=27 // pred_check_branch
          %195 = sbr.rel (%p193) target = $region32
        $region31: #{tpu_custom_call.1} parent=27 // pred_region
          %197 = dma.done [#allocation3], 64
        $region32: #{tpu_custom_call.1} parent=27 // pred_fallthru
          _
        %s198 = sand.u32 %s52, 1
        %s199 = scalar_lea.sflag [#allocation6], %s198
        %s200 = sand.u32 %s52, 1
        %s201 = smul.addr %s200, 40
        %s202 = scalar_lea.vmem [#allocation5], %s201
        // Predicated region
        $region33: #{tpu_custom_call.1} parent=27 // pred_check
          %p203 = pneg %p65
        $region34: #{tpu_custom_call.1} parent=27 // pred_check_branch
          %205 = sbr.rel (%p203) target = $region36
        $region35: #{tpu_custom_call.1} parent=27 // pred_region
          %207 = dma.done %s199, 640
        $region36: #{tpu_custom_call.1} parent=27 // pred_fallthru
          _
        %p208 = pneg %p39
        %p209 = pneg %p36
        %s210 = sand.u32 %s52, 1
        %s211 = scalar_lea.sflag [#allocation6], %s210
        %s212 = sand.u32 %s52, 1
        %s213 = smul.addr %s212, 40
        %s214 = scalar_lea.vmem [#allocation5], %s213
        %p215 = pneg %p65
        %p216 = pneg %p62
        %p217 = pneg %p91
        %p218 = pneg %p88
        %s219 = sand.u32 %s78, 1
        %s220 = scalar_lea.sflag [#allocation4], %s219
        %s221 = sand.u32 %s78, 1
        %s222 = smul.addr %s221, 16
        %s223 = scalar_lea.vmem [#allocation7], %s222
        %p224 = pneg %p112
        %p225 = pneg %p109
        %p226 = pneg %p133
        %p227 = pneg %p130
        %s228 = smul.u32 2, %s23
        %s229 = smul.u32 2, %s23
        %p231 = scmp.eq.s32.totalorder %s23, 0
        // Predicated region
        $region37: #{tpu_custom_call.1} parent=27 // pred_check
          %p232 = pneg %p231
        $region38: #{tpu_custom_call.1} parent=27 // pred_check_branch
          %234 = sbr.rel (%p232) target = $region40
        $region39: #{tpu_custom_call.1} parent=27 // pred_region
          %vm235 = vcmask 7168
          %236 = vst.msk [vmem:[%s3] sm:$0xff] %vm235, 0.0
          %237 = vst.msk [vmem:[%s4] sm:$0xff] %vm235, 0.0
        $region40: #{tpu_custom_call.1} parent=27 // pred_fallthru
          _
        %v238 = vld [vmem:[#allocation2] sm:$0xf]
        %v239 = vld [vmem:[%s202] sm:$0xff]
        %v240 = vld [vmem:[%s202 + $0x8] sm:$0xff]
        %v241 = vld [vmem:[%s202 + $0x10] sm:$0xff]
        %v242 = vld [vmem:[%s202 + $0x18] sm:$0xff]
        %v243 = vld [vmem:[%s202 + $0x20] sm:$0x33]
        %v249 = vunpack.c.l.b16 %v239
        %v250 = vunpack.c.h.b16 %v239
        %v251 = vunpack.c.l.b16 %v240
        %v252 = vunpack.c.h.b16 %v240
        %v253 = vunpack.c.l.b16 %v241
        %v254 = vunpack.c.h.b16 %v241
        %v255 = vunpack.c.l.b16 %v242
        %v256 = vunpack.c.h.b16 %v242
        %v257 = vunpack.c.l.b16 %v243
        %v258 = vunpack.c.h.b16 %v243
        %v259 = vpack.c.b16 %v251, %v249
        %v260 = vpack.c.b16 %v252, %v250
        %v261 = vpack.c.b16 %v255, %v253
        %v262 = vpack.c.b16 %v256, %v254
        %v263 = vpack.c.b16 %v257, %v257
        %v264 = vpack.c.b16 %v258, %v258
        %vm269 = vcmask 293888
        %v271 = vsel %vm269, %v238, 0
        %vm273 = vcmask 1041408
        %v275 = vsel %vm273, %v263, 0
        %v278 = vsel %vm273, %v264, 0
        %280 = vmatpush.bf16.msra.mxu0 0
        %281 = vmatpush.bf16.msra.mxu0 0
        %282 = vmatpush.bf16.msra.mxu0 0
        %283 = vmatpush.bf16.msra.mxu0 0
        %284 = vmatpush.bf16.msra.mxu0 0
        %285 = vmatpush.bf16.msra.mxu0 %v275
        %286 = vmatpush.bf16.msra.mxu0 %v261
        %287 = vmatpush.bf16.msra.mxu0 %v259
        %288 = vmatmul.bf16.gmra.mxu0 %v271
        %v289 = vpop.f32.mrf.mxu0
        %v290 = vadd.f32 0.0, %v289
        %v291 = vpop.f32.mrf.mxu0
        %292 = vdwg.mxu0
        %293 = vmatpush.bf16.msra.mxu0 0
        %294 = vmatpush.bf16.msra.mxu0 0
        %295 = vmatpush.bf16.msra.mxu0 0
        %296 = vmatpush.bf16.msra.mxu0 0
        %297 = vmatpush.bf16.msra.mxu0 0
        %298 = vmatpush.bf16.msra.mxu0 %v278
        %299 = vmatpush.bf16.msra.mxu0 %v262
        %300 = vmatpush.bf16.msra.mxu0 %v260
        %301 = vmatmul.bf16.gmra.mxu0 %v271
        %v302 = vpop.f32.mrf.mxu0
        %v303 = vadd.f32 0.0, %v302
        %v304 = vpop.f32.mrf.mxu0
        %305 = vdwg.mxu0
        %306 = vst [vmem:[%s223] sm:$0xff] %v290
        %307 = vst [vmem:[%s223 + $0x8] sm:$0xff] %v303
        %v308 = vld [vmem:[%s3] sm:$0xff]
        %v309 = vadd.f32 %v290, %v303
        %310 = vadd.xlane.f32.xlu0 %v309
        %v311 = vpop.xlane.xlu0 %310
        %v312 = vadd.f32 %v308, %v311
        %vm313 = vcmask 7168
        %314 = vst.msk [vmem:[%s3] sm:$0xff] %vm313, %v312
        %v315 = vld [vmem:[%s4] sm:$0xff]
        %v316 = vmul.f32 %v290, %v290
        %v317 = vmul.f32 %v303, %v303
        %v318 = vadd.f32 %v316, %v317
        %319 = vadd.xlane.f32.xlu0 %v318
        %v320 = vpop.xlane.xlu0 %319
        %v321 = vadd.f32 %v315, %v320
        %322 = vst.msk [vmem:[%s4] sm:$0xff] %vm313, %v321
        %s323 = sand.u32 %s78, 1
        %s324 = scalar_lea.sflag [#allocation4], %s323
        %s325 = sand.u32 %s78, 1
        %s326 = smul.addr %s325, 16
        %s327 = scalar_lea.vmem [#allocation7], %s326
        // Predicated region
        $region41: #{tpu_custom_call.1} parent=27 // pred_check
          %p328 = pneg %p88
        $region42: #{tpu_custom_call.1} parent=27 // pred_check_branch
          %330 = sbr.rel (%p328) target = $region44
        $region43: #{tpu_custom_call.1} parent=27 // pred_region
          %s331 = smul.u32 2, %s23
          %333 = vsyncadd %s324, 0
          %s334 = smul.addr %s331, 8
          %s335 = scalar_lea.hbm %s2, %s334
          %s337 = sshll.u32 %s327, 4
          %s338 = int_to_ptr.vmem [resolvable:$true] %s337
          %s339 = sshll.u32 %s335, 4
          %s340 = int_to_ptr.hbm [resolvable:$true] %s339
          %342 = dma.vmem_to_hbm [thread:$0]  %s338, 256, %s340, %s324
        $region44: #{tpu_custom_call.1} parent=27 // pred_fallthru
          _
        // Predicated region
        $region45: #{tpu_custom_call.1} parent=27 // pred_check
          %p343 = pneg %p109
        $region46: #{tpu_custom_call.1} parent=27 // pred_check_branch
          %345 = sbr.rel (%p343) target = $region48
        $region47: #{tpu_custom_call.1} parent=27 // pred_region
          _
        $region48: #{tpu_custom_call.1} parent=27 // pred_fallthru
          _
        // Predicated region
        $region49: #{tpu_custom_call.1} parent=27 // pred_check
          %p346 = pneg %p130
        $region50: #{tpu_custom_call.1} parent=27 // pred_check_branch
          %348 = sbr.rel (%p346) target = $region52
        $region51: #{tpu_custom_call.1} parent=27 // pred_region
          _
        $region52: #{tpu_custom_call.1} parent=27 // pred_fallthru
          _
        // Predicated region
        $region53: #{tpu_custom_call.1} parent=27 // pred_check
          %p349 = pneg %p109
        $region54: #{tpu_custom_call.1} parent=27 // pred_check_branch
          %351 = sbr.rel (%p349) target = $region56
        $region55: #{tpu_custom_call.1} parent=27 // pred_region
          _
        $region56: #{tpu_custom_call.1} parent=27 // pred_fallthru
          _
        // Predicated region
        $region57: #{tpu_custom_call.1} parent=27 // pred_check
          %p352 = pneg %p130
        $region58: #{tpu_custom_call.1} parent=27 // pred_check_branch
          %354 = sbr.rel (%p352) target = $region60
        $region59: #{tpu_custom_call.1} parent=27 // pred_region
          _
        $region60: #{tpu_custom_call.1} parent=27 // pred_fallthru
          _
      $region28: #{tpu_custom_call.1} parent=5 // pred_fallthru
        _
      %p355 = scmp.le.s32.totalorder 2, %s18
      // Predicated region
      $region61: #{tpu_custom_call.1} parent=5 // pred_check
        %p356 = pneg %p355
      $region62: #{tpu_custom_call.1} parent=5 // pred_check_branch
        %358 = sbr.rel (%p356) target = $region64
      $region63: #{tpu_custom_call.1} parent=5 // pred_region
        %s359 = ssub.s32 %s18, 2
        // Predicated region
        $region65: #{tpu_custom_call.1} parent=63 // pred_check
          %p360 = pneg %p94
        $region66: #{tpu_custom_call.1} parent=63 // pred_check_branch
          %362 = sbr.rel (%p360) target = $region68
        $region67: #{tpu_custom_call.1} parent=63 // pred_region
          %s363 = sand.u32 %s79, 1
          %s364 = scalar_lea.sflag [#allocation4], %s363
          %s365 = sand.u32 %s79, 1
          %s366 = smul.addr %s365, 16
          %s367 = scalar_lea.vmem [#allocation7], %s366
          %369 = dma.done %s364, 256
        $region68: #{tpu_custom_call.1} parent=63 // pred_fallthru
          _
      $region64: #{tpu_custom_call.1} parent=5 // pred_fallthru
        _
    $region6: #{tpu_custom_call.1} parent=1 // loop_footer
      %s22 = sadd.s32 1, %s18
    $region7: #{tpu_custom_call.1} parent=1 // loop_footer_branch
      %17 = sbr.rel target = $region3
    $region8: #{tpu_custom_call.1} parent=1 // loop_exit
      _
    %370 = vsyncpa [#allocation3], 1
    %s371 = scalar_lea.sflag [#allocation3], 1
    %372 = vsyncpa %s371, 1
    %373 = vsyncpa [#allocation6], 1
    %s374 = scalar_lea.sflag [#allocation6], 1
    %375 = vsyncpa %s374, 1
    %376 = vsyncpa [#allocation4], 1
    %s377 = scalar_lea.sflag [#allocation4], 1
    %378 = vsyncpa %s377, 1

</llo_original>
